<compile_context>
chip_gen: v6e
topology: v6e:2x2x1
jax: 0.10.0
libtpu: 0.0.40
codegen_flags: <defaults>
</compile_context>

<pallas_src>
import numpy as np
import jax
import jax.numpy as jnp
from jax.experimental import pallas as pl
from jax.experimental.pallas import tpu as pltpu


def _round_up(x, m):
    return (x + m - 1) // m * m


def _ceil_div(a, b):
    return -(-a // b)


# ---------------------------------------------------------------------------
# Parameter construction (deterministic, mirrors MCBPolling.__init__)
# ---------------------------------------------------------------------------
def make_count_sketch(original_dim, projection_dim, rng):
    C = np.zeros((original_dim, projection_dim), dtype=np.float32)
    for i in range(original_dim):
        # Matches the torch module exactly: np.random.randint(0, projection_dim - 1)
        # (the last projection column is intentionally never selected, as in the spec).
        col = rng.randint(0, projection_dim - 1)
        C[i, col] = 2 * rng.randint(0, 2) - 1
    return C


def make_dft_mats(P):
    """Dense matrices implementing un-normalized onesided rfft / irfft (old torch.rfft/irfft)."""
    K = P // 2 + 1
    n = np.arange(P)[:, None]
    k = np.arange(K)[None, :]
    ang = 2.0 * np.pi * n * k / P
    cos_f = np.cos(ang).astype(np.float32)              # (P, K): y @ cos_f -> Re(rfft(y))
    sin_f = (-np.sin(ang)).astype(np.float32)           # (P, K): y @ sin_f -> Im(rfft(y))

    w = np.full((K,), 2.0, dtype=np.float32)             # Hermitian-symmetry weights
    w[0] = 1.0
    if P % 2 == 0:
        w[-1] = 1.0
    ang2 = 2.0 * np.pi * np.arange(K)[:, None] * np.arange(P)[None, :] / P
    icos = (w[:, None] * np.cos(ang2) / P).astype(np.float32)    # (K, P)
    isin = (-w[:, None] * np.sin(ang2) / P).astype(np.float32)   # (K, P)
    return cos_f, sin_f, icos, isin


def build_fused_operands(C0, C1, P):
    """Fold count-sketch + forward DFT into one (D, P) matrix per modality (exact) and
    stack the inverse-DFT matrices into a (P, P) matrix, Hermitian-packed.

    Hermitian packing: Im(rfft)[0] == 0 always, and Im(rfft)[K-1] == 0 when P is even, so
    those bins (whose elementwise product is also 0 and whose inverse rows would multiply 0)
    are dropped.  The packed re/im axis is then exactly P wide -- lane-dense for P=128."""
    cosf, sinf, icos, isin = make_dft_mats(P)
    K = P // 2 + 1
    im_hi = K - 1 if P % 2 == 0 else K                    # drop Nyquist imag bin only if even P
    fwd = np.concatenate([cosf, sinf[:, 1:im_hi]], axis=1)        # (P, P): [re | packed im]
    M0 = np.asarray(C0) @ fwd                                      # (D, P)
    M1 = np.asarray(C1) @ fwd                                      # (D, P)
    Minv = np.concatenate([icos, isin[1:im_hi, :]], axis=0)        # (P, P): [icos ; packed isin]

    # bf16 MXU feeders everywhere; accumulation stays f32 inside the kernel.
    return (jnp.asarray(M0, dtype=jnp.bfloat16),
            jnp.asarray(M1, dtype=jnp.bfloat16),
            jnp.asarray(Minv, dtype=jnp.bfloat16))


# ---------------------------------------------------------------------------
# Pallas kernel
# ---------------------------------------------------------------------------
def mcb_kernel(x0_ref, x1_ref, m0_ref, m1_ref, minv_ref, out_ref):
    # In-kernel bf16 cast of the streamed activations (VPU filler; halves HBM traffic
    # compared with a wrapper-side astype pass).
    x0 = x0_ref[...].astype(jnp.bfloat16)
    x1 = x1_ref[...].astype(jnp.bfloat16)

    # Fused count-sketch + onesided rfft (Hermitian-packed): one bf16 MXU matmul / modality.
    f0 = jnp.dot(x0, m0_ref[...], preferred_element_type=jnp.float32)
    f1 = jnp.dot(x1, m1_ref[...], preferred_element_type=jnp.float32)

    # Matches torch: elementwise .mul of the stacked (re, im) tensors,
    # i.e. re*re and im*im independently (NOT a complex multiply).
    prod = (f0 * f1).astype(jnp.bfloat16)

    # Onesided irfft via one dense inverse-DFT matmul with the packed [icos ; isin] matrix.
    out_ref[...] = jnp.dot(prod, minv_ref[...], preferred_element_type=jnp.float32)


# ---------------------------------------------------------------------------
# Wrapper
# ---------------------------------------------------------------------------
def _pick_vmem_limit_bytes():
    """Generation-aware VMEM cap: stay <=48 MiB on 64-MiB-VMEM chips (v7x), raise to
    96 MiB on 128-MiB-VMEM chips (v5e/v6e) so larger batch tiles + resident matrices fit."""
    try:
        info = pltpu.get_tpu_info()
        cap = int(getattr(info, "vmem_capacity_bytes", 128 * 1024 * 1024))
    except Exception:
        cap = 128 * 1024 * 1024
    if cap <= 64 * 1024 * 1024:
        return 48 * 1024 * 1024
    return 96 * 1024 * 1024


def mcb_pooling(x0, x1, C0, C1, *, batch_tile=256):
    B, D = x0.shape
    P = C0.shape[1]
    M0, M1, Minv = build_fused_operands(C0, C1, P)

    # Batch tiling: big tiles fill the MXU rows (128 on v5e, 256 on v6e/v7x) and amortize the
    # ~0.35 us per-grid-step overhead.  Force an even tile count when >1 so the "parallel"
    # batch axis keeps both v7x TensorCores busy every step (same total work, smaller tiles).
    nt = _ceil_div(B, batch_tile)
    if nt > 1 and nt % 2 == 1:
        nt += 1
    TB = _round_up(_ceil_div(B, nt), 8)     # sublane-aligned (f32 input blocks)
    Bp = nt * TB

    # Only materialize a pad copy when actually needed (usually Bp == B).
    x0p = x0 if Bp == B else jnp.pad(x0, ((0, Bp - B), (0, 0)))
    x1p = x1 if Bp == B else jnp.pad(x1, ((0, Bp - B), (0, 0)))

    def build(single_buffer_resident, vmem_limit_bytes):
        # Constant-index (resident) blocks: request single buffering -- their block index
        # never changes, so double-buffering them only wastes VMEM (matters on v7x, 64 MiB).
        res_kwargs = (dict(pipeline_mode=pl.Buffered(1))
                      if single_buffer_resident else {})
        in_specs = [
            pl.BlockSpec((TB, D), lambda i: (i, 0)),                  # x0 batch tile (streamed)
            pl.BlockSpec((TB, D), lambda i: (i, 0)),                  # x1 batch tile (streamed)
            pl.BlockSpec((D, P), lambda i: (0, 0), **res_kwargs),     # fused sketch+rfft, mod 0
            pl.BlockSpec((D, P), lambda i: (0, 0), **res_kwargs),     # fused sketch+rfft, mod 1
            pl.BlockSpec((P, P), lambda i: (0, 0), **res_kwargs),     # packed [icos ; isin]
        ]
        return pl.pallas_call(
            mcb_kernel,
            out_shape=jax.ShapeDtypeStruct((Bp, P), jnp.float32),
            grid=(nt,),
            in_specs=in_specs,
            out_specs=pl.BlockSpec((TB, P), lambda i: (i, 0)),
            compiler_params=pltpu.CompilerParams(
                dimension_semantics=("parallel",),     # batch tiles split across TCs on v7x
                vmem_limit_bytes=vmem_limit_bytes),
        )

    configs = [
        # Optimized configuration (single-buffered residents, generation-aware VMEM cap).
        dict(single_buffer_resident=True, vmem_limit_bytes=_pick_vmem_limit_bytes()),
        # Known-good conservative fallback (guarantees the kernel runs everywhere).
        dict(single_buffer_resident=False, vmem_limit_bytes=32 * 1024 * 1024),
    ]
    last_err = None
    for cfg in configs:
        try:
            out = build(**cfg)(x0p, x1p, M0, M1, Minv)
            jax.block_until_ready(out)
            return out[:B]
        except Exception as e:   # fall back to the conservative config on any lowering issue
            last_err = e
    raise last_err


# ---------------------------------------------------------------------------
# Pure-JAX reference (true rfft/irfft, same odd ".mul" semantics as the torch code)
# ---------------------------------------------------------------------------
def mcb_reference(x0, x1, C0, C1):
    y0 = x0 @ C0
    y1 = x1 @ C1
    f0 = jnp.fft.rfft(y0, axis=-1)
    f1 = jnp.fft.rfft(y1, axis=-1)
    prod = (f0.real * f1.real) + 1j * (f0.imag * f1.imag)
    return jnp.fft.irfft(prod, n=y0.shape[-1], axis=-1)


if __name__ == "__main__":
    B, D, P = 32, 32, 128     # batch, original_dim, projection_dim (small demo shapes)

    # Deterministic count-sketch matrices (mirrors __init__).
    rng = np.random.RandomState(0)
    C0 = jnp.asarray(make_count_sketch(D, P, rng))
    C1 = jnp.asarray(make_count_sketch(D, P, rng))

    key = jax.random.PRNGKey(0)
    k0, k1 = jax.random.split(key)
    x0 = jax.random.normal(k0, (B, D), dtype=jnp.float32)
    x1 = jax.random.normal(k1, (B, D), dtype=jnp.float32)

    phi = mcb_pooling(x0, x1, C0, C1)
    jax.block_until_ready(phi)

    ref = mcb_reference(x0, x1, C0, C1)
    phi_np = np.asarray(phi)
    ref_np = np.asarray(ref)
    # bf16 MXU feeders throughout (f32 accumulation) -> scale-normalized max-error check.
    # Re-validate the tolerance at production D before shipping (error grows ~sqrt(D)).
    err = np.max(np.abs(phi_np - ref_np)) / max(np.max(np.abs(ref_np)), 1e-6)
    assert err < 3e-2, f"normalized max error too large: {err:.4e}"
    print("KERNEL_OK")
</pallas_src>

<mosaic_0001>
module attributes {stable_mosaic.version = 11 : i64} {
  func.func @mcb_kernel(%arg0: i32, %arg1: memref<32x32xf32, #tpu.memory_space<vmem>>, %arg2: memref<32x32xf32, #tpu.memory_space<vmem>>, %arg3: memref<32x128xbf16, #tpu.memory_space<vmem>>, %arg4: memref<32x128xbf16, #tpu.memory_space<vmem>>, %arg5: memref<128x128xbf16, #tpu.memory_space<vmem>>, %arg6: memref<32x128xf32, #tpu.memory_space<vmem>>) attributes {dimension_semantics = [#tpu.dimension_semantics<parallel>], iteration_bounds = array<i64: 1>, scalar_prefetch = 0 : i64, scratch_operands = 0 : i64, tpu.core_type = #tpu.core_type<tc>, window_params = [{transform_indices = @transform_0, window_bounds = array<i64: 32, 32>}, {transform_indices = @transform_1, window_bounds = array<i64: 32, 32>}, {pipeline_mode = #tpu.pipeline_mode<synchronous>, transform_indices = @transform_2, window_bounds = array<i64: 32, 128>}, {pipeline_mode = #tpu.pipeline_mode<synchronous>, transform_indices = @transform_3, window_bounds = array<i64: 32, 128>}, {pipeline_mode = #tpu.pipeline_mode<synchronous>, transform_indices = @transform_4, window_bounds = array<i64: 128, 128>}, {transform_indices = @transform_5, window_bounds = array<i64: 32, 128>}]} {
    %c0 = arith.constant 0 : index
    %c0_0 = arith.constant 0 : index
    %0 = vector.load %arg1[%c0, %c0_0] : memref<32x32xf32, #tpu.memory_space<vmem>>, vector<32x32xf32>
    %1 = arith.truncf %0 : vector<32x32xf32> to vector<32x32xbf16>
    %c0_1 = arith.constant 0 : index
    %c0_2 = arith.constant 0 : index
    %2 = vector.load %arg2[%c0_1, %c0_2] : memref<32x32xf32, #tpu.memory_space<vmem>>, vector<32x32xf32>
    %3 = arith.truncf %2 : vector<32x32xf32> to vector<32x32xbf16>
    %c0_3 = arith.constant 0 : index
    %c0_4 = arith.constant 0 : index
    %4 = vector.load %arg3[%c0_3, %c0_4] : memref<32x128xbf16, #tpu.memory_space<vmem>>, vector<32x128xbf16>
    %cst = arith.constant dense<0.000000e+00> : vector<32x128xf32>
    %5 = tpu.matmul %1, %4, %cst {dimension_numbers = #tpu.dot_dimension_numbers<[1], [0], [0], [1], [0, 0, 1, 1], [], []>} : vector<32x32xbf16>, vector<32x128xbf16>, vector<32x128xf32> -> vector<32x128xf32>
    %c0_5 = arith.constant 0 : index
    %c0_6 = arith.constant 0 : index
    %6 = vector.load %arg4[%c0_5, %c0_6] : memref<32x128xbf16, #tpu.memory_space<vmem>>, vector<32x128xbf16>
    %cst_7 = arith.constant dense<0.000000e+00> : vector<32x128xf32>
    %7 = tpu.matmul %3, %6, %cst_7 {dimension_numbers = #tpu.dot_dimension_numbers<[1], [0], [0], [1], [0, 0, 1, 1], [], []>} : vector<32x32xbf16>, vector<32x128xbf16>, vector<32x128xf32> -> vector<32x128xf32>
    %8 = arith.mulf %5, %7 : vector<32x128xf32>
    %9 = arith.truncf %8 : vector<32x128xf32> to vector<32x128xbf16>
    %c0_8 = arith.constant 0 : index
    %c0_9 = arith.constant 0 : index
    %10 = vector.load %arg5[%c0_8, %c0_9] : memref<128x128xbf16, #tpu.memory_space<vmem>>, vector<128x128xbf16>
    %cst_10 = arith.constant dense<0.000000e+00> : vector<32x128xf32>
    %11 = tpu.matmul %9, %10, %cst_10 {dimension_numbers = #tpu.dot_dimension_numbers<[1], [0], [0], [1], [0, 0, 1, 1], [], []>} : vector<32x128xbf16>, vector<128x128xbf16>, vector<32x128xf32> -> vector<32x128xf32>
    %c0_11 = arith.constant 0 : index
    %c0_12 = arith.constant 0 : index
    %12 = vector.load %arg6[%c0_11, %c0_12] : memref<32x128xf32, #tpu.memory_space<vmem>>, vector<32x128xf32>
    tpu.vector_store %arg6[%c0_11, %c0_12], %11 {strides = array<i32>} : memref<32x128xf32, #tpu.memory_space<vmem>>, vector<32x128xf32>,
    return
  }
  func.func @transform_0(%arg0: i32) -> (i32, i32) {
    %c0_i32 = arith.constant 0 : i32
    %c0_i32_0 = arith.constant 0 : i32
    return %arg0, %c0_i32 : i32, i32
  }
  func.func @transform_1(%arg0: i32) -> (i32, i32) {
    %c0_i32 = arith.constant 0 : i32
    %c0_i32_0 = arith.constant 0 : i32
    return %arg0, %c0_i32 : i32, i32
  }
  func.func @transform_2(%arg0: i32) -> (i32, i32) {
    %c0_i32 = arith.constant 0 : i32
    %c0_i32_0 = arith.constant 0 : i32
    %c0_i32_1 = arith.constant 0 : i32
    return %c0_i32, %c0_i32_0 : i32, i32
  }
  func.func @transform_3(%arg0: i32) -> (i32, i32) {
    %c0_i32 = arith.constant 0 : i32
    %c0_i32_0 = arith.constant 0 : i32
    %c0_i32_1 = arith.constant 0 : i32
    return %c0_i32, %c0_i32_0 : i32, i32
  }
  func.func @transform_4(%arg0: i32) -> (i32, i32) {
    %c0_i32 = arith.constant 0 : i32
    %c0_i32_0 = arith.constant 0 : i32
    %c0_i32_1 = arith.constant 0 : i32
    return %c0_i32, %c0_i32_0 : i32, i32
  }
  func.func @transform_5(%arg0: i32) -> (i32, i32) {
    %c0_i32 = arith.constant 0 : i32
    %c0_i32_0 = arith.constant 0 : i32
    return %arg0, %c0_i32 : i32, i32
  }
}

module attributes {stable_mosaic.version = 11 : i64} {
  func.func @mcb_kernel(%arg0: i32, %arg1: memref<32x32xf32, #tpu.memory_space<vmem>>, %arg2: memref<32x32xf32, #tpu.memory_space<vmem>>, %arg3: memref<32x128xbf16, #tpu.memory_space<vmem>>, %arg4: memref<32x128xbf16, #tpu.memory_space<vmem>>, %arg5: memref<128x128xbf16, #tpu.memory_space<vmem>>, %arg6: memref<32x128xf32, #tpu.memory_space<vmem>>) attributes {dimension_semantics = [#tpu.dimension_semantics<parallel>], iteration_bounds = array<i64: 1>, scalar_prefetch = 0 : i64, scratch_operands = 0 : i64, tpu.core_type = #tpu.core_type<tc>, window_params = [{transform_indices = @transform_0, window_bounds = array<i64: 32, 32>}, {transform_indices = @transform_1, window_bounds = array<i64: 32, 32>}, {pipeline_mode = #tpu.pipeline_mode<synchronous>, transform_indices = @transform_2, window_bounds = array<i64: 32, 128>}, {pipeline_mode = #tpu.pipeline_mode<synchronous>, transform_indices = @transform_3, window_bounds = array<i64: 32, 128>}, {pipeline_mode = #tpu.pipeline_mode<synchronous>, transform_indices = @transform_4, window_bounds = array<i64: 128, 128>}, {transform_indices = @transform_5, window_bounds = array<i64: 32, 128>}]} {
    %c0 = arith.constant 0 : index
    %c0_0 = arith.constant 0 : index
    %0 = vector.load %arg1[%c0, %c0_0] : memref<32x32xf32, #tpu.memory_space<vmem>>, vector<32x32xf32>
    %1 = arith.truncf %0 : vector<32x32xf32> to vector<32x32xbf16>
    %c0_1 = arith.constant 0 : index
    %c0_2 = arith.constant 0 : index
    %2 = vector.load %arg2[%c0_1, %c0_2] : memref<32x32xf32, #tpu.memory_space<vmem>>, vector<32x32xf32>
    %3 = arith.truncf %2 : vector<32x32xf32> to vector<32x32xbf16>
    %c0_3 = arith.constant 0 : index
    %c0_4 = arith.constant 0 : index
    %4 = vector.load %arg3[%c0_3, %c0_4] : memref<32x128xbf16, #tpu.memory_space<vmem>>, vector<32x128xbf16>
    %cst = arith.constant dense<0.000000e+00> : vector<32x128xf32>
    %5 = tpu.matmul %1, %4, %cst {dimension_numbers = #tpu.dot_dimension_numbers<[1], [0], [0], [1], [0, 0, 1, 1], [], []>} : vector<32x32xbf16>, vector<32x128xbf16>, vector<32x128xf32> -> vector<32x128xf32>
    %c0_5 = arith.constant 0 : index
    %c0_6 = arith.constant 0 : index
    %6 = vector.load %arg4[%c0_5, %c0_6] : memref<32x128xbf16, #tpu.memory_space<vmem>>, vector<32x128xbf16>
    %cst_7 = arith.constant dense<0.000000e+00> : vector<32x128xf32>
    %7 = tpu.matmul %3, %6, %cst_7 {dimension_numbers = #tpu.dot_dimension_numbers<[1], [0], [0], [1], [0, 0, 1, 1], [], []>} : vector<32x32xbf16>, vector<32x128xbf16>, vector<32x128xf32> -> vector<32x128xf32>
    %8 = arith.mulf %5, %7 : vector<32x128xf32>
    %9 = arith.truncf %8 : vector<32x128xf32> to vector<32x128xbf16>
    %c0_8 = arith.constant 0 : index
    %c0_9 = arith.constant 0 : index
    %10 = vector.load %arg5[%c0_8, %c0_9] : memref<128x128xbf16, #tpu.memory_space<vmem>>, vector<128x128xbf16>
    %cst_10 = arith.constant dense<0.000000e+00> : vector<32x128xf32>
    %11 = tpu.matmul %9, %10, %cst_10 {dimension_numbers = #tpu.dot_dimension_numbers<[1], [0], [0], [1], [0, 0, 1, 1], [], []>} : vector<32x128xbf16>, vector<128x128xbf16>, vector<32x128xf32> -> vector<32x128xf32>
    %c0_11 = arith.constant 0 : index
    %c0_12 = arith.constant 0 : index
    %12 = vector.load %arg6[%c0_11, %c0_12] : memref<32x128xf32, #tpu.memory_space<vmem>>, vector<32x128xf32>
    tpu.vector_store %arg6[%c0_11, %c0_12], %11 {strides = array<i32>} : memref<32x128xf32, #tpu.memory_space<vmem>>, vector<32x128xf32>,
    return
  }
  func.func @transform_0(%arg0: i32) -> (i32, i32) {
    %c0_i32 = arith.constant 0 : i32
    %c0_i32_0 = arith.constant 0 : i32
    return %arg0, %c0_i32 : i32, i32
  }
  func.func @transform_1(%arg0: i32) -> (i32, i32) {
    %c0_i32 = arith.constant 0 : i32
    %c0_i32_0 = arith.constant 0 : i32
    return %arg0, %c0_i32 : i32, i32
  }
  func.func @transform_2(%arg0: i32) -> (i32, i32) {
    %c0_i32 = arith.constant 0 : i32
    %c0_i32_0 = arith.constant 0 : i32
    %c0_i32_1 = arith.constant 0 : i32
    return %c0_i32, %c0_i32_0 : i32, i32
  }
  func.func @transform_3(%arg0: i32) -> (i32, i32) {
    %c0_i32 = arith.constant 0 : i32
    %c0_i32_0 = arith.constant 0 : i32
    %c0_i32_1 = arith.constant 0 : i32
    return %c0_i32, %c0_i32_0 : i32, i32
  }
  func.func @transform_4(%arg0: i32) -> (i32, i32) {
    %c0_i32 = arith.constant 0 : i32
    %c0_i32_0 = arith.constant 0 : i32
    %c0_i32_1 = arith.constant 0 : i32
    return %c0_i32, %c0_i32_0 : i32, i32
  }
  func.func @transform_5(%arg0: i32) -> (i32, i32) {
    %c0_i32 = arith.constant 0 : i32
    %c0_i32_0 = arith.constant 0 : i32
    return %arg0, %c0_i32 : i32, i32
  }
}

</mosaic_0001>

<llo_original>
// kernel: tpu_custom_call.1
$region0: #{tpu_custom_call.1}
  #allocation0 [shape = 'u32[]', space=smem, size = 0x4, offset = 0x4, fixed_abs, tag = 'smem constant byte address 0x4 - core index']
  #allocation1 [shape = 'u32[144,128]{1,0:T(1,128)}', space=vmem, size = 0x12000, scoped, tag = 'internal scratch']
  %s0 = inlined_call_operand.hbm [shape: f32[32,32], index: 0, kind: input, shape index: {}]
  %s1 = inlined_call_operand.hbm [shape: f32[32,32], index: 1, kind: input, shape index: {}]
  %s2 = inlined_call_operand.hbm [shape: bf16[32,128], index: 2, kind: input, shape index: {}]
  %s3 = inlined_call_operand.hbm [shape: bf16[32,128], index: 3, kind: input, shape index: {}]
  %s4 = inlined_call_operand.hbm [shape: bf16[128,128], index: 4, kind: input, shape index: {}]
  %s5 = inlined_call_operand.hbm [shape: f32[32,128], index: 5, kind: output, shape index: {}]
  %s6 = sld [smem:[#allocation0]]
  $region50: #{tpu_custom_call.1} parent=0
    _
  %s8 = ssub.s32 1, %s6
  %s9 = scalar_select 0, %s8, %s6
  $region1: #{tpu_custom_call.1} parent=0
    #allocation2 [shape = 'u8[16384]{0}', space=vmem, size = 0x4000, scoped, tag = 'input window, operand 0, single buffered']
    #allocation3 [shape = 's32[1]{0}', space=sflag, size = 0x4, scoped, tag = 'scoped memory for tpu_custom_call.1']
    #allocation4 [shape = 's32[1]{0}', space=sflag, size = 0x4, scoped, tag = 'scoped memory for tpu_custom_call.1']
    #allocation5 [shape = 'u8[16384]{0}', space=vmem, size = 0x4000, scoped, tag = 'input window, operand 1, single buffered']
    #allocation6 [shape = 's32[1]{0}', space=sflag, size = 0x4, scoped, tag = 'scoped memory for tpu_custom_call.1']
    #allocation7 [shape = 'u8[8192]{0}', space=vmem, size = 0x2000, scoped, tag = 'input window, operand 2, single buffered']
    #allocation8 [shape = 'u8[8192]{0}', space=vmem, size = 0x2000, scoped, tag = 'input window, operand 3, single buffered']
    #allocation9 [shape = 's32[1]{0}', space=sflag, size = 0x4, scoped, tag = 'scoped memory for tpu_custom_call.1']
    #allocation10 [shape = 'u8[32768]{0}', space=vmem, size = 0x8000, scoped, tag = 'input window, operand 4, single buffered']
    #allocation11 [shape = 'u8[16384]{0}', space=vmem, size = 0x4000, scoped, tag = 'output window, operand 0, single buffered']
    %10 = vsyncpa [#allocation3], 0
    %11 = vsyncpa [#allocation6], 0
    %12 = vsyncpa [#allocation9], 0
    %13 = vsyncpa [#allocation4], 0
    // Predicated region
    $region2: #{tpu_custom_call.1} parent=1 // pred_check
      _
    $region3: #{tpu_custom_call.1} parent=1 // pred_check_branch
      %15 = sbr.rel (0) target = $region5
    $region4: #{tpu_custom_call.1} parent=1 // pred_region
      %s17 = ssub.s32 512, 512
      %18 = vsyncadd [#allocation3], %s17
      %s19 = sshll.u32 [#allocation2], 4
      %s20 = int_to_ptr.vmem [resolvable:$true] %s19
      %25 = dma.hbm_to_vmem [thread:$0]  %s0, 512, %s20, [#allocation3], 128, 128, 8
    $region5: #{tpu_custom_call.1} parent=1 // pred_fallthru
      _
    // Predicated region
    $region6: #{tpu_custom_call.1} parent=1 // pred_check
      _
    $region7: #{tpu_custom_call.1} parent=1 // pred_check_branch
      %27 = sbr.rel (0) target = $region9
    $region8: #{tpu_custom_call.1} parent=1 // pred_region
      %s29 = ssub.s32 512, 512
      %30 = vsyncadd [#allocation6], %s29
      %s31 = sshll.u32 [#allocation5], 4
      %s32 = int_to_ptr.vmem [resolvable:$true] %s31
      %37 = dma.hbm_to_vmem [thread:$0]  %s1, 512, %s32, [#allocation6], 128, 128, 8
    $region9: #{tpu_custom_call.1} parent=1 // pred_fallthru
      _
    // Predicated region
    $region10: #{tpu_custom_call.1} parent=1 // pred_check
      _
    $region11: #{tpu_custom_call.1} parent=1 // pred_check_branch
      %39 = sbr.rel (0) target = $region13
    $region12: #{tpu_custom_call.1} parent=1 // pred_region
      %s41 = ssub.s32 256, 256
      %42 = vsyncadd [#allocation6], %s41
      %s43 = sshll.u32 [#allocation7], 4
      %s44 = int_to_ptr.vmem [resolvable:$true] %s43
      %49 = dma.hbm_to_vmem [thread:$0]  %s2, 256, %s44, [#allocation6], 64, 64, 4
    $region13: #{tpu_custom_call.1} parent=1 // pred_fallthru
      _
    // Predicated region
    $region14: #{tpu_custom_call.1} parent=1 // pred_check
      _
    $region15: #{tpu_custom_call.1} parent=1 // pred_check_branch
      %51 = sbr.rel (0) target = $region17
    $region16: #{tpu_custom_call.1} parent=1 // pred_region
      %s53 = ssub.s32 256, 256
      %54 = vsyncadd [#allocation9], %s53
      %s55 = sshll.u32 [#allocation8], 4
      %s56 = int_to_ptr.vmem [resolvable:$true] %s55
      %61 = dma.hbm_to_vmem [thread:$0]  %s3, 256, %s56, [#allocation9], 64, 64, 4
    $region17: #{tpu_custom_call.1} parent=1 // pred_fallthru
      _
    // Predicated region
    $region18: #{tpu_custom_call.1} parent=1 // pred_check
      _
    $region19: #{tpu_custom_call.1} parent=1 // pred_check_branch
      %63 = sbr.rel (0) target = $region21
    $region20: #{tpu_custom_call.1} parent=1 // pred_region
      %s65 = ssub.s32 1024, 1024
      %66 = vsyncadd [#allocation9], %s65
      %s67 = sshll.u32 [#allocation10], 4
      %s68 = int_to_ptr.vmem [resolvable:$true] %s67
      %73 = dma.hbm_to_vmem [thread:$0]  %s4, 1024, %s68, [#allocation9], 64, 64, 4
    $region21: #{tpu_custom_call.1} parent=1 // pred_fallthru
      _
    // Predicated region
    $region22: #{tpu_custom_call.1} parent=1 // pred_check
      _
    $region23: #{tpu_custom_call.1} parent=1 // pred_check_branch
      %75 = sbr.rel (0) target = $region25
    $region24: #{tpu_custom_call.1} parent=1 // pred_region
      %76 = dma.done [#allocation3], 512
    $region25: #{tpu_custom_call.1} parent=1 // pred_fallthru
      _
    // Predicated region
    $region26: #{tpu_custom_call.1} parent=1 // pred_check
      _
    $region27: #{tpu_custom_call.1} parent=1 // pred_check_branch
      %78 = sbr.rel (0) target = $region29
    $region28: #{tpu_custom_call.1} parent=1 // pred_region
      %79 = dma.done [#allocation6], 512
    $region29: #{tpu_custom_call.1} parent=1 // pred_fallthru
      _
    // Predicated region
    $region30: #{tpu_custom_call.1} parent=1 // pred_check
      _
    $region31: #{tpu_custom_call.1} parent=1 // pred_check_branch
      %81 = sbr.rel (0) target = $region33
    $region32: #{tpu_custom_call.1} parent=1 // pred_region
      %82 = dma.done [#allocation6], 256
    $region33: #{tpu_custom_call.1} parent=1 // pred_fallthru
      _
    // Predicated region
    $region34: #{tpu_custom_call.1} parent=1 // pred_check
      _
    $region35: #{tpu_custom_call.1} parent=1 // pred_check_branch
      %84 = sbr.rel (0) target = $region37
    $region36: #{tpu_custom_call.1} parent=1 // pred_region
      %85 = dma.done [#allocation9], 256
    $region37: #{tpu_custom_call.1} parent=1 // pred_fallthru
      _
    // Predicated region
    $region38: #{tpu_custom_call.1} parent=1 // pred_check
      _
    $region39: #{tpu_custom_call.1} parent=1 // pred_check_branch
      %87 = sbr.rel (0) target = $region41
    $region40: #{tpu_custom_call.1} parent=1 // pred_region
      %88 = dma.done [#allocation9], 1024
    $region41: #{tpu_custom_call.1} parent=1 // pred_fallthru
      _
    %v90 = vld [vmem:[#allocation2] sm:$0xff]
    %v91 = vld [vmem:[#allocation2 + $0x8] sm:$0xff]
    %v92 = vld [vmem:[#allocation2 + $0x10] sm:$0xff]
    %v93 = vld [vmem:[#allocation2 + $0x18] sm:$0xff]
    %v94 = vpack.c.bf16 %v91, %v90
    %v95 = vpack.c.bf16 %v93, %v92
    %v96 = vld [vmem:[#allocation5] sm:$0xff]
    %v97 = vld [vmem:[#allocation5 + $0x8] sm:$0xff]
    %v98 = vld [vmem:[#allocation5 + $0x10] sm:$0xff]
    %v99 = vld [vmem:[#allocation5 + $0x18] sm:$0xff]
    %v100 = vpack.c.bf16 %v97, %v96
    %v101 = vpack.c.bf16 %v99, %v98
    %v102 = vld [vmem:[#allocation7] sm:$0xf]
    %v103 = vld [vmem:[#allocation7 + $0x4] sm:$0xf]
    %v104 = vld [vmem:[#allocation7 + $0x8] sm:$0xf]
    %v105 = vld [vmem:[#allocation7 + $0xc] sm:$0xf]
    %v110 = vunpack.c.l.b16 %v102
    %v111 = vunpack.c.l.b16 %v103
    %v112 = vunpack.c.l.b16 %v104
    %v113 = vunpack.c.l.b16 %v105
    %v114 = vpack.c.b16 %v111, %v110
    %v115 = vpack.c.b16 %v113, %v112
    %vm118 = vcmask 261120
    %v120 = vsel %vm118, %v94, 0
    %v123 = vsel %vm118, %v95, 0
    %125 = vmatprep.subr.bf16.mxu0 0
    %126 = vmatpush1.bf16.msra.mxu0 0
    %127 = vmatprep.subr.bf16.mxu0 0
    %128 = vmatpush1.bf16.msra.mxu0 0
    %129 = vmatprep.subr.bf16.mxu0 0
    %130 = vmatpush1.bf16.msra.mxu0 0
    %131 = vmatprep.subr.bf16.mxu0 0
    %132 = vmatpush1.bf16.msra.mxu0 0
    %133 = vmatprep.subr.bf16.mxu0 0
    %134 = vmatpush1.bf16.msra.mxu0 0
    %135 = vmatprep.subr.bf16.mxu0 0
    %136 = vmatpush1.bf16.msra.mxu0 0
    %137 = vmatprep.subr.bf16.mxu0 0
    %138 = vmatpush1.bf16.msra.mxu0 %v115
    %139 = vmatprep.subr.bf16.mxu0 0
    %140 = vmatpush1.bf16.msra.mxu0 %v114
    %141 = vmatprep.subr.bf16.mxu0 0
    %142 = vmatpush2.bf16.msra.mxu0 0
    %143 = vmatprep.subr.bf16.mxu0 0
    %144 = vmatpush2.bf16.msra.mxu0 0
    %145 = vmatprep.subr.bf16.mxu0 0
    %146 = vmatpush2.bf16.msra.mxu0 0
    %147 = vmatprep.subr.bf16.mxu0 0
    %148 = vmatpush2.bf16.msra.mxu0 0
    %149 = vmatprep.subr.bf16.mxu0 0
    %150 = vmatpush2.bf16.msra.mxu0 0
    %151 = vmatprep.subr.bf16.mxu0 0
    %152 = vmatpush2.bf16.msra.mxu0 0
    %153 = vmatprep.subr.bf16.mxu0 0
    %154 = vmatpush2.bf16.msra.mxu0 0
    %155 = vmatprep.subr.bf16.mxu0 0
    %156 = vmatpush2.bf16.msra.mxu0 0
    %157 = vmatprep.mubr.bf16.mxu0 0
    %158 = vmatmul.mubr.bf16.gmra.mxu0 %v120
    %v159 = vpop.f32.mrf.mxu0
    %v160 = vadd.f32 0.0, %v159
    %v161 = vpop.f32.mrf.mxu0
    %v162 = vpop.f32.mrf.mxu0
    %v163 = vadd.f32 0.0, %v162
    %v164 = vpop.f32.mrf.mxu0
    %165 = vmatprep.mubr.bf16.mxu0 0
    %166 = vmatmul.mubr.bf16.gmra.mxu0 %v123
    %v167 = vpop.f32.mrf.mxu0
    %v168 = vadd.f32 0.0, %v167
    %v169 = vpop.f32.mrf.mxu0
    %v170 = vpop.f32.mrf.mxu0
    %v171 = vadd.f32 0.0, %v170
    %v172 = vpop.f32.mrf.mxu0
    %173 = vdwg.mxu0
    %v174 = vld [vmem:[#allocation8] sm:$0xf]
    %v175 = vld [vmem:[#allocation8 + $0x4] sm:$0xf]
    %v176 = vld [vmem:[#allocation8 + $0x8] sm:$0xf]
    %v177 = vld [vmem:[#allocation8 + $0xc] sm:$0xf]
    %v182 = vunpack.c.l.b16 %v174
    %v183 = vunpack.c.l.b16 %v175
    %v184 = vunpack.c.l.b16 %v176
    %v185 = vunpack.c.l.b16 %v177
    %v186 = vpack.c.b16 %v183, %v182
    %v187 = vpack.c.b16 %v185, %v184
    %v191 = vsel %vm118, %v100, 0
    %v194 = vsel %vm118, %v101, 0
    %196 = vmatprep.subr.bf16.mxu0 0
    %197 = vmatpush1.bf16.msra.mxu0 0
    %198 = vmatprep.subr.bf16.mxu0 0
    %199 = vmatpush1.bf16.msra.mxu0 0
    %200 = vmatprep.subr.bf16.mxu0 0
    %201 = vmatpush1.bf16.msra.mxu0 0
    %202 = vmatprep.subr.bf16.mxu0 0
    %203 = vmatpush1.bf16.msra.mxu0 0
    %204 = vmatprep.subr.bf16.mxu0 0
    %205 = vmatpush1.bf16.msra.mxu0 0
    %206 = vmatprep.subr.bf16.mxu0 0
    %207 = vmatpush1.bf16.msra.mxu0 0
    %208 = vmatprep.subr.bf16.mxu0 0
    %209 = vmatpush1.bf16.msra.mxu0 %v187
    %210 = vmatprep.subr.bf16.mxu0 0
    %211 = vmatpush1.bf16.msra.mxu0 %v186
    %212 = vmatprep.subr.bf16.mxu0 0
    %213 = vmatpush2.bf16.msra.mxu0 0
    %214 = vmatprep.subr.bf16.mxu0 0
    %215 = vmatpush2.bf16.msra.mxu0 0
    %216 = vmatprep.subr.bf16.mxu0 0
    %217 = vmatpush2.bf16.msra.mxu0 0
    %218 = vmatprep.subr.bf16.mxu0 0
    %219 = vmatpush2.bf16.msra.mxu0 0
    %220 = vmatprep.subr.bf16.mxu0 0
    %221 = vmatpush2.bf16.msra.mxu0 0
    %222 = vmatprep.subr.bf16.mxu0 0
    %223 = vmatpush2.bf16.msra.mxu0 0
    %224 = vmatprep.subr.bf16.mxu0 0
    %225 = vmatpush2.bf16.msra.mxu0 0
    %226 = vmatprep.subr.bf16.mxu0 0
    %227 = vmatpush2.bf16.msra.mxu0 0
    %228 = vmatprep.mubr.bf16.mxu0 0
    %229 = vmatmul.mubr.bf16.gmra.mxu0 %v191
    %v230 = vpop.f32.mrf.mxu0
    %v231 = vadd.f32 0.0, %v230
    %v232 = vpop.f32.mrf.mxu0
    %v233 = vpop.f32.mrf.mxu0
    %v234 = vadd.f32 0.0, %v233
    %v235 = vpop.f32.mrf.mxu0
    %236 = vmatprep.mubr.bf16.mxu0 0
    %237 = vmatmul.mubr.bf16.gmra.mxu0 %v194
    %v238 = vpop.f32.mrf.mxu0
    %v239 = vadd.f32 0.0, %v238
    %v240 = vpop.f32.mrf.mxu0
    %v241 = vpop.f32.mrf.mxu0
    %v242 = vadd.f32 0.0, %v241
    %v243 = vpop.f32.mrf.mxu0
    %244 = vdwg.mxu0
    %v245 = vmul.f32 %v160, %v231
    %v246 = vmul.f32 %v163, %v234
    %v247 = vmul.f32 %v168, %v239
    %v248 = vmul.f32 %v171, %v242
    %v249 = vpack.c.bf16 %v246, %v245
    %v250 = vpack.c.bf16 %v248, %v247
    %v251 = vld [vmem:[#allocation10] sm:$0xf]
    %v252 = vld [vmem:[#allocation10 + $0x4] sm:$0xf]
    %v253 = vld [vmem:[#allocation10 + $0x8] sm:$0xf]
    %v254 = vld [vmem:[#allocation10 + $0xc] sm:$0xf]
    %v255 = vld [vmem:[#allocation10 + $0x10] sm:$0xf]
    %v256 = vld [vmem:[#allocation10 + $0x14] sm:$0xf]
    %v257 = vld [vmem:[#allocation10 + $0x18] sm:$0xf]
    %v258 = vld [vmem:[#allocation10 + $0x1c] sm:$0xf]
    %v259 = vld [vmem:[#allocation10 + $0x20] sm:$0xf]
    %v260 = vld [vmem:[#allocation10 + $0x24] sm:$0xf]
    %v261 = vld [vmem:[#allocation10 + $0x28] sm:$0xf]
    %v262 = vld [vmem:[#allocation10 + $0x2c] sm:$0xf]
    %v263 = vld [vmem:[#allocation10 + $0x30] sm:$0xf]
    %v264 = vld [vmem:[#allocation10 + $0x34] sm:$0xf]
    %v265 = vld [vmem:[#allocation10 + $0x38] sm:$0xf]
    %v266 = vld [vmem:[#allocation10 + $0x3c] sm:$0xf]
    %v283 = vunpack.c.l.b16 %v251
    %v284 = vunpack.c.l.b16 %v252
    %v285 = vunpack.c.l.b16 %v253
    %v286 = vunpack.c.l.b16 %v254
    %v287 = vunpack.c.l.b16 %v255
    %v288 = vunpack.c.l.b16 %v256
    %v289 = vunpack.c.l.b16 %v257
    %v290 = vunpack.c.l.b16 %v258
    %v291 = vunpack.c.l.b16 %v259
    %v292 = vunpack.c.l.b16 %v260
    %v293 = vunpack.c.l.b16 %v261
    %v294 = vunpack.c.l.b16 %v262
    %v295 = vunpack.c.l.b16 %v263
    %v296 = vunpack.c.l.b16 %v264
    %v297 = vunpack.c.l.b16 %v265
    %v298 = vunpack.c.l.b16 %v266
    %v299 = vpack.c.b16 %v284, %v283
    %v300 = vpack.c.b16 %v286, %v285
    %v301 = vpack.c.b16 %v288, %v287
    %v302 = vpack.c.b16 %v290, %v289
    %v303 = vpack.c.b16 %v292, %v291
    %v304 = vpack.c.b16 %v294, %v293
    %v305 = vpack.c.b16 %v296, %v295
    %v306 = vpack.c.b16 %v298, %v297
    %315 = vmatprep.subr.bf16.mxu0 0
    %316 = vmatpush1.bf16.msra.mxu0 %v306
    %317 = vmatprep.subr.bf16.mxu0 0
    %318 = vmatpush1.bf16.msra.mxu0 %v305
    %319 = vmatprep.subr.bf16.mxu0 0
    %320 = vmatpush1.bf16.msra.mxu0 %v304
    %321 = vmatprep.subr.bf16.mxu0 0
    %322 = vmatpush1.bf16.msra.mxu0 %v303
    %323 = vmatprep.subr.bf16.mxu0 0
    %324 = vmatpush1.bf16.msra.mxu0 %v302
    %325 = vmatprep.subr.bf16.mxu0 0
    %326 = vmatpush1.bf16.msra.mxu0 %v301
    %327 = vmatprep.subr.bf16.mxu0 0
    %328 = vmatpush1.bf16.msra.mxu0 %v300
    %329 = vmatprep.subr.bf16.mxu0 0
    %330 = vmatpush1.bf16.msra.mxu0 %v299
    %331 = vmatprep.subr.bf16.mxu0 0
    %332 = vmatpush2.bf16.msra.mxu0 0
    %333 = vmatprep.subr.bf16.mxu0 0
    %334 = vmatpush2.bf16.msra.mxu0 0
    %335 = vmatprep.subr.bf16.mxu0 0
    %336 = vmatpush2.bf16.msra.mxu0 0
    %337 = vmatprep.subr.bf16.mxu0 0
    %338 = vmatpush2.bf16.msra.mxu0 0
    %339 = vmatprep.subr.bf16.mxu0 0
    %340 = vmatpush2.bf16.msra.mxu0 0
    %341 = vmatprep.subr.bf16.mxu0 0
    %342 = vmatpush2.bf16.msra.mxu0 0
    %343 = vmatprep.subr.bf16.mxu0 0
    %344 = vmatpush2.bf16.msra.mxu0 0
    %345 = vmatprep.subr.bf16.mxu0 0
    %346 = vmatpush2.bf16.msra.mxu0 0
    %347 = vmatprep.mubr.bf16.mxu0 0
    %348 = vmatmul.mubr.bf16.gmra.mxu0 %v249
    %v349 = vpop.f32.mrf.mxu0
    %v350 = vadd.f32 0.0, %v349
    %v351 = vpop.f32.mrf.mxu0
    %v352 = vpop.f32.mrf.mxu0
    %v353 = vadd.f32 0.0, %v352
    %v354 = vpop.f32.mrf.mxu0
    %355 = vmatprep.mubr.bf16.mxu0 0
    %356 = vmatmul.mubr.bf16.gmra.mxu0 %v250
    %v357 = vpop.f32.mrf.mxu0
    %v358 = vadd.f32 0.0, %v357
    %v359 = vpop.f32.mrf.mxu0
    %v360 = vpop.f32.mrf.mxu0
    %v361 = vadd.f32 0.0, %v360
    %v362 = vpop.f32.mrf.mxu0
    %363 = vdwg.mxu0
    %364 = vst [vmem:[#allocation11] sm:$0xff] %v350
    %365 = vst [vmem:[#allocation11 + $0x8] sm:$0xff] %v353
    %366 = vst [vmem:[#allocation11 + $0x10] sm:$0xff] %v358
    %367 = vst [vmem:[#allocation11 + $0x18] sm:$0xff] %v361
    // Predicated region
    $region42: #{tpu_custom_call.1} parent=1 // pred_check
      _
    $region43: #{tpu_custom_call.1} parent=1 // pred_check_branch
      %369 = sbr.rel (0) target = $region45
    $region44: #{tpu_custom_call.1} parent=1 // pred_region
      %s371 = ssub.s32 512, 512
      %372 = vsyncadd [#allocation4], %s371
      %s373 = sshll.u32 [#allocation11], 4
      %s374 = int_to_ptr.vmem [resolvable:$true] %s373
      %379 = dma.vmem_to_hbm [thread:$0]  %s374, 512, %s5, [#allocation4], 128, 128, 8
    $region45: #{tpu_custom_call.1} parent=1 // pred_fallthru
      _
    // Predicated region
    $region46: #{tpu_custom_call.1} parent=1 // pred_check
      _
    $region47: #{tpu_custom_call.1} parent=1 // pred_check_branch
      %381 = sbr.rel (0) target = $region49
    $region48: #{tpu_custom_call.1} parent=1 // pred_region
      %382 = dma.done [#allocation4], 512
    $region49: #{tpu_custom_call.1} parent=1 // pred_fallthru
      _
    %383 = vsyncpa [#allocation3], 1
    %384 = vsyncpa [#allocation6], 1
    %385 = vsyncpa [#allocation9], 1
    %386 = vsyncpa [#allocation4], 1

// kernel: tpu_custom_call.1
$region0: #{tpu_custom_call.1}
  #allocation0 [shape = 'u32[]', space=smem, size = 0x4, offset = 0x4, fixed_abs, tag = 'smem constant byte address 0x4 - core index']
  #allocation1 [shape = 'u32[144,128]{1,0:T(1,128)}', space=vmem, size = 0x12000, scoped, tag = 'internal scratch']
  %s0 = inlined_call_operand.hbm [shape: f32[32,32], index: 0, kind: input, shape index: {}]
  %s1 = inlined_call_operand.hbm [shape: f32[32,32], index: 1, kind: input, shape index: {}]
  %s2 = inlined_call_operand.hbm [shape: bf16[32,128], index: 2, kind: input, shape index: {}]
  %s3 = inlined_call_operand.hbm [shape: bf16[32,128], index: 3, kind: input, shape index: {}]
  %s4 = inlined_call_operand.hbm [shape: bf16[128,128], index: 4, kind: input, shape index: {}]
  %s5 = inlined_call_operand.hbm [shape: f32[32,128], index: 5, kind: output, shape index: {}]
  %s6 = sld [smem:[#allocation0]]
  $region50: #{tpu_custom_call.1} parent=0
    _
  %s8 = ssub.s32 1, %s6
  %s9 = scalar_select 0, %s8, %s6
  $region1: #{tpu_custom_call.1} parent=0
    #allocation2 [shape = 'u8[16384]{0}', space=vmem, size = 0x4000, scoped, tag = 'input window, operand 0, single buffered']
    #allocation3 [shape = 's32[1]{0}', space=sflag, size = 0x4, scoped, tag = 'scoped memory for tpu_custom_call.1']
    #allocation4 [shape = 's32[1]{0}', space=sflag, size = 0x4, scoped, tag = 'scoped memory for tpu_custom_call.1']
    #allocation5 [shape = 'u8[16384]{0}', space=vmem, size = 0x4000, scoped, tag = 'input window, operand 1, single buffered']
    #allocation6 [shape = 's32[1]{0}', space=sflag, size = 0x4, scoped, tag = 'scoped memory for tpu_custom_call.1']
    #allocation7 [shape = 'u8[8192]{0}', space=vmem, size = 0x2000, scoped, tag = 'input window, operand 2, single buffered']
    #allocation8 [shape = 'u8[8192]{0}', space=vmem, size = 0x2000, scoped, tag = 'input window, operand 3, single buffered']
    #allocation9 [shape = 's32[1]{0}', space=sflag, size = 0x4, scoped, tag = 'scoped memory for tpu_custom_call.1']
    #allocation10 [shape = 'u8[32768]{0}', space=vmem, size = 0x8000, scoped, tag = 'input window, operand 4, single buffered']
    #allocation11 [shape = 'u8[16384]{0}', space=vmem, size = 0x4000, scoped, tag = 'output window, operand 0, single buffered']
    %10 = vsyncpa [#allocation3], 0
    %11 = vsyncpa [#allocation6], 0
    %12 = vsyncpa [#allocation9], 0
    %13 = vsyncpa [#allocation4], 0
    // Predicated region
    $region2: #{tpu_custom_call.1} parent=1 // pred_check
      _
    $region3: #{tpu_custom_call.1} parent=1 // pred_check_branch
      %15 = sbr.rel (0) target = $region5
    $region4: #{tpu_custom_call.1} parent=1 // pred_region
      %s17 = ssub.s32 512, 512
      %18 = vsyncadd [#allocation3], %s17
      %s19 = sshll.u32 [#allocation2], 4
      %s20 = int_to_ptr.vmem [resolvable:$true] %s19
      %25 = dma.hbm_to_vmem [thread:$0]  %s0, 512, %s20, [#allocation3], 128, 128, 8
    $region5: #{tpu_custom_call.1} parent=1 // pred_fallthru
      _
    // Predicated region
    $region6: #{tpu_custom_call.1} parent=1 // pred_check
      _
    $region7: #{tpu_custom_call.1} parent=1 // pred_check_branch
      %27 = sbr.rel (0) target = $region9
    $region8: #{tpu_custom_call.1} parent=1 // pred_region
      %s29 = ssub.s32 512, 512
      %30 = vsyncadd [#allocation6], %s29
      %s31 = sshll.u32 [#allocation5], 4
      %s32 = int_to_ptr.vmem [resolvable:$true] %s31
      %37 = dma.hbm_to_vmem [thread:$0]  %s1, 512, %s32, [#allocation6], 128, 128, 8
    $region9: #{tpu_custom_call.1} parent=1 // pred_fallthru
      _
    // Predicated region
    $region10: #{tpu_custom_call.1} parent=1 // pred_check
      _
    $region11: #{tpu_custom_call.1} parent=1 // pred_check_branch
      %39 = sbr.rel (0) target = $region13
    $region12: #{tpu_custom_call.1} parent=1 // pred_region
      %s41 = ssub.s32 256, 256
      %42 = vsyncadd [#allocation6], %s41
      %s43 = sshll.u32 [#allocation7], 4
      %s44 = int_to_ptr.vmem [resolvable:$true] %s43
      %49 = dma.hbm_to_vmem [thread:$0]  %s2, 256, %s44, [#allocation6], 64, 64, 4
    $region13: #{tpu_custom_call.1} parent=1 // pred_fallthru
      _
    // Predicated region
    $region14: #{tpu_custom_call.1} parent=1 // pred_check
      _
    $region15: #{tpu_custom_call.1} parent=1 // pred_check_branch
      %51 = sbr.rel (0) target = $region17
    $region16: #{tpu_custom_call.1} parent=1 // pred_region
      %s53 = ssub.s32 256, 256
      %54 = vsyncadd [#allocation9], %s53
      %s55 = sshll.u32 [#allocation8], 4
      %s56 = int_to_ptr.vmem [resolvable:$true] %s55
      %61 = dma.hbm_to_vmem [thread:$0]  %s3, 256, %s56, [#allocation9], 64, 64, 4
    $region17: #{tpu_custom_call.1} parent=1 // pred_fallthru
      _
    // Predicated region
    $region18: #{tpu_custom_call.1} parent=1 // pred_check
      _
    $region19: #{tpu_custom_call.1} parent=1 // pred_check_branch
      %63 = sbr.rel (0) target = $region21
    $region20: #{tpu_custom_call.1} parent=1 // pred_region
      %s65 = ssub.s32 1024, 1024
      %66 = vsyncadd [#allocation9], %s65
      %s67 = sshll.u32 [#allocation10], 4
      %s68 = int_to_ptr.vmem [resolvable:$true] %s67
      %73 = dma.hbm_to_vmem [thread:$0]  %s4, 1024, %s68, [#allocation9], 64, 64, 4
    $region21: #{tpu_custom_call.1} parent=1 // pred_fallthru
      _
    // Predicated region
    $region22: #{tpu_custom_call.1} parent=1 // pred_check
      _
    $region23: #{tpu_custom_call.1} parent=1 // pred_check_branch
      %75 = sbr.rel (0) target = $region25
    $region24: #{tpu_custom_call.1} parent=1 // pred_region
      %76 = dma.done [#allocation3], 512
    $region25: #{tpu_custom_call.1} parent=1 // pred_fallthru
      _
    // Predicated region
    $region26: #{tpu_custom_call.1} parent=1 // pred_check
      _
    $region27: #{tpu_custom_call.1} parent=1 // pred_check_branch
      %78 = sbr.rel (0) target = $region29
    $region28: #{tpu_custom_call.1} parent=1 // pred_region
      %79 = dma.done [#allocation6], 512
    $region29: #{tpu_custom_call.1} parent=1 // pred_fallthru
      _
    // Predicated region
    $region30: #{tpu_custom_call.1} parent=1 // pred_check
      _
    $region31: #{tpu_custom_call.1} parent=1 // pred_check_branch
      %81 = sbr.rel (0) target = $region33
    $region32: #{tpu_custom_call.1} parent=1 // pred_region
      %82 = dma.done [#allocation6], 256
    $region33: #{tpu_custom_call.1} parent=1 // pred_fallthru
      _
    // Predicated region
    $region34: #{tpu_custom_call.1} parent=1 // pred_check
      _
    $region35: #{tpu_custom_call.1} parent=1 // pred_check_branch
      %84 = sbr.rel (0) target = $region37
    $region36: #{tpu_custom_call.1} parent=1 // pred_region
      %85 = dma.done [#allocation9], 256
    $region37: #{tpu_custom_call.1} parent=1 // pred_fallthru
      _
    // Predicated region
    $region38: #{tpu_custom_call.1} parent=1 // pred_check
      _
    $region39: #{tpu_custom_call.1} parent=1 // pred_check_branch
      %87 = sbr.rel (0) target = $region41
    $region40: #{tpu_custom_call.1} parent=1 // pred_region
      %88 = dma.done [#allocation9], 1024
    $region41: #{tpu_custom_call.1} parent=1 // pred_fallthru
      _
    %v90 = vld [vmem:[#allocation2] sm:$0xff]
    %v91 = vld [vmem:[#allocation2 + $0x8] sm:$0xff]
    %v92 = vld [vmem:[#allocation2 + $0x10] sm:$0xff]
    %v93 = vld [vmem:[#allocation2 + $0x18] sm:$0xff]
    %v94 = vpack.c.bf16 %v91, %v90
    %v95 = vpack.c.bf16 %v93, %v92
    %v96 = vld [vmem:[#allocation5] sm:$0xff]
    %v97 = vld [vmem:[#allocation5 + $0x8] sm:$0xff]
    %v98 = vld [vmem:[#allocation5 + $0x10] sm:$0xff]
    %v99 = vld [vmem:[#allocation5 + $0x18] sm:$0xff]
    %v100 = vpack.c.bf16 %v97, %v96
    %v101 = vpack.c.bf16 %v99, %v98
    %v102 = vld [vmem:[#allocation7] sm:$0xf]
    %v103 = vld [vmem:[#allocation7 + $0x4] sm:$0xf]
    %v104 = vld [vmem:[#allocation7 + $0x8] sm:$0xf]
    %v105 = vld [vmem:[#allocation7 + $0xc] sm:$0xf]
    %v110 = vunpack.c.l.b16 %v102
    %v111 = vunpack.c.l.b16 %v103
    %v112 = vunpack.c.l.b16 %v104
    %v113 = vunpack.c.l.b16 %v105
    %v114 = vpack.c.b16 %v111, %v110
    %v115 = vpack.c.b16 %v113, %v112
    %vm118 = vcmask 261120
    %v120 = vsel %vm118, %v94, 0
    %v123 = vsel %vm118, %v95, 0
    %125 = vmatprep.subr.bf16.mxu0 0
    %126 = vmatpush1.bf16.msra.mxu0 0
    %127 = vmatprep.subr.bf16.mxu0 0
    %128 = vmatpush1.bf16.msra.mxu0 0
    %129 = vmatprep.subr.bf16.mxu0 0
    %130 = vmatpush1.bf16.msra.mxu0 0
    %131 = vmatprep.subr.bf16.mxu0 0
    %132 = vmatpush1.bf16.msra.mxu0 0
    %133 = vmatprep.subr.bf16.mxu0 0
    %134 = vmatpush1.bf16.msra.mxu0 0
    %135 = vmatprep.subr.bf16.mxu0 0
    %136 = vmatpush1.bf16.msra.mxu0 0
    %137 = vmatprep.subr.bf16.mxu0 0
    %138 = vmatpush1.bf16.msra.mxu0 %v115
    %139 = vmatprep.subr.bf16.mxu0 0
    %140 = vmatpush1.bf16.msra.mxu0 %v114
    %141 = vmatprep.subr.bf16.mxu0 0
    %142 = vmatpush2.bf16.msra.mxu0 0
    %143 = vmatprep.subr.bf16.mxu0 0
    %144 = vmatpush2.bf16.msra.mxu0 0
    %145 = vmatprep.subr.bf16.mxu0 0
    %146 = vmatpush2.bf16.msra.mxu0 0
    %147 = vmatprep.subr.bf16.mxu0 0
    %148 = vmatpush2.bf16.msra.mxu0 0
    %149 = vmatprep.subr.bf16.mxu0 0
    %150 = vmatpush2.bf16.msra.mxu0 0
    %151 = vmatprep.subr.bf16.mxu0 0
    %152 = vmatpush2.bf16.msra.mxu0 0
    %153 = vmatprep.subr.bf16.mxu0 0
    %154 = vmatpush2.bf16.msra.mxu0 0
    %155 = vmatprep.subr.bf16.mxu0 0
    %156 = vmatpush2.bf16.msra.mxu0 0
    %157 = vmatprep.mubr.bf16.mxu0 0
    %158 = vmatmul.mubr.bf16.gmra.mxu0 %v120
    %v159 = vpop.f32.mrf.mxu0
    %v160 = vadd.f32 0.0, %v159
    %v161 = vpop.f32.mrf.mxu0
    %v162 = vpop.f32.mrf.mxu0
    %v163 = vadd.f32 0.0, %v162
    %v164 = vpop.f32.mrf.mxu0
    %165 = vmatprep.mubr.bf16.mxu0 0
    %166 = vmatmul.mubr.bf16.gmra.mxu0 %v123
    %v167 = vpop.f32.mrf.mxu0
    %v168 = vadd.f32 0.0, %v167
    %v169 = vpop.f32.mrf.mxu0
    %v170 = vpop.f32.mrf.mxu0
    %v171 = vadd.f32 0.0, %v170
    %v172 = vpop.f32.mrf.mxu0
    %173 = vdwg.mxu0
    %v174 = vld [vmem:[#allocation8] sm:$0xf]
    %v175 = vld [vmem:[#allocation8 + $0x4] sm:$0xf]
    %v176 = vld [vmem:[#allocation8 + $0x8] sm:$0xf]
    %v177 = vld [vmem:[#allocation8 + $0xc] sm:$0xf]
    %v182 = vunpack.c.l.b16 %v174
    %v183 = vunpack.c.l.b16 %v175
    %v184 = vunpack.c.l.b16 %v176
    %v185 = vunpack.c.l.b16 %v177
    %v186 = vpack.c.b16 %v183, %v182
    %v187 = vpack.c.b16 %v185, %v184
    %v191 = vsel %vm118, %v100, 0
    %v194 = vsel %vm118, %v101, 0
    %196 = vmatprep.subr.bf16.mxu0 0
    %197 = vmatpush1.bf16.msra.mxu0 0
    %198 = vmatprep.subr.bf16.mxu0 0
    %199 = vmatpush1.bf16.msra.mxu0 0
    %200 = vmatprep.subr.bf16.mxu0 0
    %201 = vmatpush1.bf16.msra.mxu0 0
    %202 = vmatprep.subr.bf16.mxu0 0
    %203 = vmatpush1.bf16.msra.mxu0 0
    %204 = vmatprep.subr.bf16.mxu0 0
    %205 = vmatpush1.bf16.msra.mxu0 0
    %206 = vmatprep.subr.bf16.mxu0 0
    %207 = vmatpush1.bf16.msra.mxu0 0
    %208 = vmatprep.subr.bf16.mxu0 0
    %209 = vmatpush1.bf16.msra.mxu0 %v187
    %210 = vmatprep.subr.bf16.mxu0 0
    %211 = vmatpush1.bf16.msra.mxu0 %v186
    %212 = vmatprep.subr.bf16.mxu0 0
    %213 = vmatpush2.bf16.msra.mxu0 0
    %214 = vmatprep.subr.bf16.mxu0 0
    %215 = vmatpush2.bf16.msra.mxu0 0
    %216 = vmatprep.subr.bf16.mxu0 0
    %217 = vmatpush2.bf16.msra.mxu0 0
    %218 = vmatprep.subr.bf16.mxu0 0
    %219 = vmatpush2.bf16.msra.mxu0 0
    %220 = vmatprep.subr.bf16.mxu0 0
    %221 = vmatpush2.bf16.msra.mxu0 0
    %222 = vmatprep.subr.bf16.mxu0 0
    %223 = vmatpush2.bf16.msra.mxu0 0
    %224 = vmatprep.subr.bf16.mxu0 0
    %225 = vmatpush2.bf16.msra.mxu0 0
    %226 = vmatprep.subr.bf16.mxu0 0
    %227 = vmatpush2.bf16.msra.mxu0 0
    %228 = vmatprep.mubr.bf16.mxu0 0
    %229 = vmatmul.mubr.bf16.gmra.mxu0 %v191
    %v230 = vpop.f32.mrf.mxu0
    %v231 = vadd.f32 0.0, %v230
    %v232 = vpop.f32.mrf.mxu0
    %v233 = vpop.f32.mrf.mxu0
    %v234 = vadd.f32 0.0, %v233
    %v235 = vpop.f32.mrf.mxu0
    %236 = vmatprep.mubr.bf16.mxu0 0
    %237 = vmatmul.mubr.bf16.gmra.mxu0 %v194
    %v238 = vpop.f32.mrf.mxu0
    %v239 = vadd.f32 0.0, %v238
    %v240 = vpop.f32.mrf.mxu0
    %v241 = vpop.f32.mrf.mxu0
    %v242 = vadd.f32 0.0, %v241
    %v243 = vpop.f32.mrf.mxu0
    %244 = vdwg.mxu0
    %v245 = vmul.f32 %v160, %v231
    %v246 = vmul.f32 %v163, %v234
    %v247 = vmul.f32 %v168, %v239
    %v248 = vmul.f32 %v171, %v242
    %v249 = vpack.c.bf16 %v246, %v245
    %v250 = vpack.c.bf16 %v248, %v247
    %v251 = vld [vmem:[#allocation10] sm:$0xf]
    %v252 = vld [vmem:[#allocation10 + $0x4] sm:$0xf]
    %v253 = vld [vmem:[#allocation10 + $0x8] sm:$0xf]
    %v254 = vld [vmem:[#allocation10 + $0xc] sm:$0xf]
    %v255 = vld [vmem:[#allocation10 + $0x10] sm:$0xf]
    %v256 = vld [vmem:[#allocation10 + $0x14] sm:$0xf]
    %v257 = vld [vmem:[#allocation10 + $0x18] sm:$0xf]
    %v258 = vld [vmem:[#allocation10 + $0x1c] sm:$0xf]
    %v259 = vld [vmem:[#allocation10 + $0x20] sm:$0xf]
    %v260 = vld [vmem:[#allocation10 + $0x24] sm:$0xf]
    %v261 = vld [vmem:[#allocation10 + $0x28] sm:$0xf]
    %v262 = vld [vmem:[#allocation10 + $0x2c] sm:$0xf]
    %v263 = vld [vmem:[#allocation10 + $0x30] sm:$0xf]
    %v264 = vld [vmem:[#allocation10 + $0x34] sm:$0xf]
    %v265 = vld [vmem:[#allocation10 + $0x38] sm:$0xf]
    %v266 = vld [vmem:[#allocation10 + $0x3c] sm:$0xf]
    %v283 = vunpack.c.l.b16 %v251
    %v284 = vunpack.c.l.b16 %v252
    %v285 = vunpack.c.l.b16 %v253
    %v286 = vunpack.c.l.b16 %v254
    %v287 = vunpack.c.l.b16 %v255
    %v288 = vunpack.c.l.b16 %v256
    %v289 = vunpack.c.l.b16 %v257
    %v290 = vunpack.c.l.b16 %v258
    %v291 = vunpack.c.l.b16 %v259
    %v292 = vunpack.c.l.b16 %v260
    %v293 = vunpack.c.l.b16 %v261
    %v294 = vunpack.c.l.b16 %v262
    %v295 = vunpack.c.l.b16 %v263
    %v296 = vunpack.c.l.b16 %v264
    %v297 = vunpack.c.l.b16 %v265
    %v298 = vunpack.c.l.b16 %v266
    %v299 = vpack.c.b16 %v284, %v283
    %v300 = vpack.c.b16 %v286, %v285
    %v301 = vpack.c.b16 %v288, %v287
    %v302 = vpack.c.b16 %v290, %v289
    %v303 = vpack.c.b16 %v292, %v291
    %v304 = vpack.c.b16 %v294, %v293
    %v305 = vpack.c.b16 %v296, %v295
    %v306 = vpack.c.b16 %v298, %v297
    %315 = vmatprep.subr.bf16.mxu0 0
    %316 = vmatpush1.bf16.msra.mxu0 %v306
    %317 = vmatprep.subr.bf16.mxu0 0
    %318 = vmatpush1.bf16.msra.mxu0 %v305
    %319 = vmatprep.subr.bf16.mxu0 0
    %320 = vmatpush1.bf16.msra.mxu0 %v304
    %321 = vmatprep.subr.bf16.mxu0 0
    %322 = vmatpush1.bf16.msra.mxu0 %v303
    %323 = vmatprep.subr.bf16.mxu0 0
    %324 = vmatpush1.bf16.msra.mxu0 %v302
    %325 = vmatprep.subr.bf16.mxu0 0
    %326 = vmatpush1.bf16.msra.mxu0 %v301
    %327 = vmatprep.subr.bf16.mxu0 0
    %328 = vmatpush1.bf16.msra.mxu0 %v300
    %329 = vmatprep.subr.bf16.mxu0 0
    %330 = vmatpush1.bf16.msra.mxu0 %v299
    %331 = vmatprep.subr.bf16.mxu0 0
    %332 = vmatpush2.bf16.msra.mxu0 0
    %333 = vmatprep.subr.bf16.mxu0 0
    %334 = vmatpush2.bf16.msra.mxu0 0
    %335 = vmatprep.subr.bf16.mxu0 0
    %336 = vmatpush2.bf16.msra.mxu0 0
    %337 = vmatprep.subr.bf16.mxu0 0
    %338 = vmatpush2.bf16.msra.mxu0 0
    %339 = vmatprep.subr.bf16.mxu0 0
    %340 = vmatpush2.bf16.msra.mxu0 0
    %341 = vmatprep.subr.bf16.mxu0 0
    %342 = vmatpush2.bf16.msra.mxu0 0
    %343 = vmatprep.subr.bf16.mxu0 0
    %344 = vmatpush2.bf16.msra.mxu0 0
    %345 = vmatprep.subr.bf16.mxu0 0
    %346 = vmatpush2.bf16.msra.mxu0 0
    %347 = vmatprep.mubr.bf16.mxu0 0
    %348 = vmatmul.mubr.bf16.gmra.mxu0 %v249
    %v349 = vpop.f32.mrf.mxu0
    %v350 = vadd.f32 0.0, %v349
    %v351 = vpop.f32.mrf.mxu0
    %v352 = vpop.f32.mrf.mxu0
    %v353 = vadd.f32 0.0, %v352
    %v354 = vpop.f32.mrf.mxu0
    %355 = vmatprep.mubr.bf16.mxu0 0
    %356 = vmatmul.mubr.bf16.gmra.mxu0 %v250
    %v357 = vpop.f32.mrf.mxu0
    %v358 = vadd.f32 0.0, %v357
    %v359 = vpop.f32.mrf.mxu0
    %v360 = vpop.f32.mrf.mxu0
    %v361 = vadd.f32 0.0, %v360
    %v362 = vpop.f32.mrf.mxu0
    %363 = vdwg.mxu0
    %364 = vst [vmem:[#allocation11] sm:$0xff] %v350
    %365 = vst [vmem:[#allocation11 + $0x8] sm:$0xff] %v353
    %366 = vst [vmem:[#allocation11 + $0x10] sm:$0xff] %v358
    %367 = vst [vmem:[#allocation11 + $0x18] sm:$0xff] %v361
    // Predicated region
    $region42: #{tpu_custom_call.1} parent=1 // pred_check
      _
    $region43: #{tpu_custom_call.1} parent=1 // pred_check_branch
      %369 = sbr.rel (0) target = $region45
    $region44: #{tpu_custom_call.1} parent=1 // pred_region
      %s371 = ssub.s32 512, 512
      %372 = vsyncadd [#allocation4], %s371
      %s373 = sshll.u32 [#allocation11], 4
      %s374 = int_to_ptr.vmem [resolvable:$true] %s373
      %379 = dma.vmem_to_hbm [thread:$0]  %s374, 512, %s5, [#allocation4], 128, 128, 8
    $region45: #{tpu_custom_call.1} parent=1 // pred_fallthru
      _
    // Predicated region
    $region46: #{tpu_custom_call.1} parent=1 // pred_check
      _
    $region47: #{tpu_custom_call.1} parent=1 // pred_check_branch
      %381 = sbr.rel (0) target = $region49
    $region48: #{tpu_custom_call.1} parent=1 // pred_region
      %382 = dma.done [#allocation4], 512
    $region49: #{tpu_custom_call.1} parent=1 // pred_fallthru
      _
    %383 = vsyncpa [#allocation3], 1
    %384 = vsyncpa [#allocation6], 1
    %385 = vsyncpa [#allocation9], 1
    %386 = vsyncpa [#allocation4], 1

</llo_original>
